<compile_context>
chip_gen: v6e
topology: v6e:2x2x1
jax: 0.10.0
libtpu: 0.0.40
codegen_flags: <defaults>
</compile_context>

<pallas_src>
import jax
import jax.numpy as jnp
from jax.experimental import pallas as pl
from jax.experimental.pallas import tpu as pltpu


def bilinear_matrix(n_in, n_out):
    """Interpolation matrix for 1-D bilinear upsample with align_corners=True."""
    out_idx = jnp.arange(n_out, dtype=jnp.float32)
    src = out_idx * (n_in - 1) / (n_out - 1)
    i0 = jnp.clip(jnp.floor(src).astype(jnp.int32), 0, n_in - 1)
    i1 = jnp.clip(i0 + 1, 0, n_in - 1)
    w1 = src - i0.astype(jnp.float32)
    w0 = 1.0 - w1
    m = jnp.zeros((n_out, n_in), jnp.float32)
    rows = jnp.arange(n_out)
    m = m.at[rows, i0].add(w0)
    m = m.at[rows, i1].add(w1)
    return m


def make_kernel(W2, HW2):
    def kernel(x1_ref, u_ref, wlat_ref, x2_ref, blat_ref, wconv_ref, bnb_ref,
               mask_ref, out_ref):
        # ---- bilinear upsample: one (N*c_out, HW) @ (HW, HW2) MXU matmul ----
        up = jnp.dot(x1_ref[...], u_ref[...], preferred_element_type=jnp.float32)

        # ---- 1x1 lateral conv: one block-diagonal (N*c_out, N*c_in) @ (N*c_in, HW2) ----
        lat = jnp.dot(wlat_ref[...], x2_ref[...], preferred_element_type=jnp.float32)
        y = up + lat + blat_ref[...]                     # (N*c_out, HW2)

        # ---- 3x3 SAME conv: 9 lane-rolls + precomputed masks, one stacked MXU matmul ----
        taps = []
        t = 0
        for dh in (-1, 0, 1):
            for dw in (-1, 0, 1):
                d = dh * W2 + dw
                if d == 0:
                    taps.append(y)                        # center tap: mask is all ones
                else:
                    rolled = pltpu.roll(y, shift=(-d) % HW2, axis=1)
                    taps.append(rolled * mask_ref[t:t + 1, :])
                t += 1
        stacked = jnp.concatenate(taps, axis=0)          # (9*N*c_out, HW2)
        conv = jnp.dot(wconv_ref[...], stacked, preferred_element_type=jnp.float32)

        # ---- BN shift (scale already folded into the conv weights) + ReLU ----
        out_ref[...] = jnp.maximum(conv + bnb_ref[...], 0.0)

    return kernel


def up_new_forward(x1_nchw, x2_nchw, params):
    """Pallas implementation of Up_New.forward. Inputs/outputs are NCHW like PyTorch."""
    w_lat, b_lat, w_conv, gamma, beta, r_mean, r_var, eps = params

    N, c_out, H, W = x1_nchw.shape
    N2, c_in, H2, W2 = x2_nchw.shape
    assert N2 == N and H2 == 2 * H and W2 == 2 * W
    HW = H * W
    HW2 = H2 * W2
    NC = N * c_out

    # Dense separable upsample matrix (align_corners=True): up_flat = x1_flat @ U.
    UH = bilinear_matrix(H, H2)                                       # (H2, H)
    UW = bilinear_matrix(W, W2)                                       # (W2, W)
    U = jnp.einsum('ph,qw->hwpq', UH, UW).reshape(HW, HW2)            # (HW, HW2)

    eyeN = jnp.eye(N, dtype=jnp.float32)

    # 1x1 lateral conv as a block-diagonal matmul over the (N*c_in, HW2) reshape of x2.
    wlat2d = w_lat[:, :, 0, 0].astype(jnp.float32)                    # (c_out, c_in)
    wlat_big = jnp.einsum('oi,nm->nomi', wlat2d, eyeN).reshape(NC, N * c_in)
    blat_big = jnp.tile(b_lat, N).reshape(NC, 1)

    # 3x3 conv taps (t = (dh+1)*3 + (dw+1)); BN scale folded into the output rows,
    # then expanded block-diagonally across the batch.
    k3 = jnp.transpose(w_conv, (2, 3, 0, 1)).reshape(9, c_out, c_out)  # [t, o, i]
    inv = gamma / jnp.sqrt(r_var + eps)
    k3_scaled = k3 * inv[None, :, None]
    wconv_big = jnp.einsum('toi,nm->notmi', k3_scaled, eyeN).reshape(NC, 9 * NC)
    bnb_big = jnp.tile(beta - r_mean * inv, N).reshape(NC, 1)

    # Per-tap boundary masks for the rolled windows (precomputed; grid-invariant).
    p = jnp.arange(HW2, dtype=jnp.int32) // W2
    q = jnp.arange(HW2, dtype=jnp.int32) % W2
    masks = []
    for dh in (-1, 0, 1):
        for dw in (-1, 0, 1):
            ok = (p + dh >= 0) & (p + dh < H2) & (q + dw >= 0) & (q + dw < W2)
            masks.append(ok.astype(jnp.float32))
    mask_arr = jnp.stack(masks, axis=0)                                # (9, HW2)

    # Free NCHW reshapes into the channel-first, lane-dense kernel layout.
    x1_flat = x1_nchw.reshape(NC, HW)
    x2_flat = x2_nchw.reshape(N * c_in, HW2)

    kernel = make_kernel(W2, HW2)
    vmem_spec = pl.BlockSpec(memory_space=pltpu.MemorySpace.VMEM)

    out_flat = pl.pallas_call(
        kernel,
        out_shape=jax.ShapeDtypeStruct((NC, HW2), jnp.float32),
        in_specs=[vmem_spec] * 8,
        out_specs=vmem_spec,
        compiler_params=pltpu.CompilerParams(vmem_limit_bytes=4 * 1024 * 1024),
    )(x1_flat, U, wlat_big, x2_flat, blat_big, wconv_big, bnb_big, mask_arr)

    # (N*c_out, HW2) -> NCHW is a free reshape (no transpose).
    return out_flat.reshape(N, c_out, H2, W2)


def reference_forward(x1_nchw, x2_nchw, params):
    """Pure-JAX reference matching PyTorch semantics (BN in inference mode)."""
    w_lat, b_lat, w_conv, gamma, beta, r_mean, r_var, eps = params
    _, _, H, W = x1_nchw.shape
    _, _, H2, W2 = x2_nchw.shape
    UH = bilinear_matrix(H, H2)
    UW = bilinear_matrix(W, W2)
    up = jnp.einsum('ph,nchw->ncpw', UH, x1_nchw)
    up = jnp.einsum('qw,ncpw->ncpq', UW, up)
    lat = jnp.einsum('oi,nihw->nohw', w_lat[:, :, 0, 0], x2_nchw) \
        + b_lat[None, :, None, None]
    y = up + lat
    z = jax.lax.conv_general_dilated(
        y, w_conv, window_strides=(1, 1), padding='SAME',
        dimension_numbers=('NCHW', 'OIHW', 'NCHW'))
    z = (z - r_mean[None, :, None, None]) / jnp.sqrt(r_var[None, :, None, None] + eps)
    z = z * gamma[None, :, None, None] + beta[None, :, None, None]
    return jnp.maximum(z, 0.0)


if __name__ == "__main__":
    N, c_in, c_out = 2, 8, 4
    H, W = 8, 8
    H2, W2 = 2 * H, 2 * W

    key = jax.random.PRNGKey(0)
    k1, k2, k3k, k4, k5 = jax.random.split(key, 5)

    x1 = jax.random.normal(k1, (N, c_out, H, W), jnp.float32)     # fed to Upsample
    x2 = jax.random.normal(k2, (N, c_in, H2, W2), jnp.float32)    # fed to lateral 1x1 conv

    # Deterministic parameter init (shapes from the module's __init__).
    w_lat = jax.random.normal(k3k, (c_out, c_in, 1, 1), jnp.float32) * 0.1
    b_lat = jax.random.normal(k4, (c_out,), jnp.float32) * 0.1
    w_conv = jax.random.normal(k5, (c_out, c_out, 3, 3), jnp.float32) * 0.1
    gamma = jnp.ones((c_out,), jnp.float32)
    beta = jnp.zeros((c_out,), jnp.float32)
    r_mean = jnp.zeros((c_out,), jnp.float32)
    r_var = jnp.ones((c_out,), jnp.float32)
    eps = 1e-5

    params = (w_lat, b_lat, w_conv, gamma, beta, r_mean, r_var, eps)

    out = up_new_forward(x1, x2, params)
    out = jax.block_until_ready(out)

    ref = reference_forward(x1, x2, params)
    assert out.shape == (N, c_out, H2, W2), out.shape
    assert jnp.allclose(out, ref, rtol=1e-4, atol=1e-4), \
        f"max abs err = {jnp.max(jnp.abs(out - ref))}"

    print("KERNEL_OK")
</pallas_src>

<mosaic_0001>
module attributes {stable_mosaic.version = 11 : i64} {
  func.func @kernel(%arg0: memref<8x64xf32, #tpu.memory_space<vmem>>, %arg1: memref<64x256xf32, #tpu.memory_space<vmem>>, %arg2: memref<8x16xf32, #tpu.memory_space<vmem>>, %arg3: memref<16x256xf32, #tpu.memory_space<vmem>>, %arg4: memref<8x1xf32, #tpu.memory_space<vmem>>, %arg5: memref<8x72xf32, #tpu.memory_space<vmem>>, %arg6: memref<8x1xf32, #tpu.memory_space<vmem>>, %arg7: memref<9x256xf32, #tpu.memory_space<vmem>>, %arg8: memref<8x256xf32, #tpu.memory_space<vmem>>) attributes {dimension_semantics = [], scalar_prefetch = 0 : i64, scratch_operands = 0 : i64, tpu.core_type = #tpu.core_type<tc>} {
    %c0 = arith.constant 0 : index
    %c0_0 = arith.constant 0 : index
    %0 = vector.load %arg0[%c0, %c0_0] : memref<8x64xf32, #tpu.memory_space<vmem>>, vector<8x64xf32>
    %c0_1 = arith.constant 0 : index
    %c0_2 = arith.constant 0 : index
    %1 = vector.load %arg1[%c0_1, %c0_2] : memref<64x256xf32, #tpu.memory_space<vmem>>, vector<64x256xf32>
    %cst = arith.constant dense<0.000000e+00> : vector<8x256xf32>
    %2 = tpu.matmul %0, %1, %cst {dimension_numbers = #tpu.dot_dimension_numbers<[1], [0], [0], [1], [0, 0, 1, 1], [], []>} : vector<8x64xf32>, vector<64x256xf32>, vector<8x256xf32> -> vector<8x256xf32>
    %c0_3 = arith.constant 0 : index
    %c0_4 = arith.constant 0 : index
    %3 = vector.load %arg2[%c0_3, %c0_4] : memref<8x16xf32, #tpu.memory_space<vmem>>, vector<8x16xf32>
    %c0_5 = arith.constant 0 : index
    %c0_6 = arith.constant 0 : index
    %4 = vector.load %arg3[%c0_5, %c0_6] : memref<16x256xf32, #tpu.memory_space<vmem>>, vector<16x256xf32>
    %cst_7 = arith.constant dense<0.000000e+00> : vector<8x256xf32>
    %5 = tpu.matmul %3, %4, %cst_7 {dimension_numbers = #tpu.dot_dimension_numbers<[1], [0], [0], [1], [0, 0, 1, 1], [], []>} : vector<8x16xf32>, vector<16x256xf32>, vector<8x256xf32> -> vector<8x256xf32>
    %6 = arith.addf %2, %5 : vector<8x256xf32>
    %c0_8 = arith.constant 0 : index
    %c0_9 = arith.constant 0 : index
    %7 = vector.load %arg4[%c0_8, %c0_9] : memref<8x1xf32, #tpu.memory_space<vmem>>, vector<8x1xf32>
    %8 = vector.broadcast %7 : vector<8x1xf32> to vector<8x256xf32>
    %9 = arith.addf %6, %8 : vector<8x256xf32>
    %c17_i32 = arith.constant 17 : i32
    %10 = tpu.dynamic_rotate %9 by %c17_i32 dim 1 : vector<8x256xf32>, i32 -> vector<8x256xf32>
    %c0_10 = arith.constant 0 : index
    %c0_11 = arith.constant 0 : index
    %11 = vector.load %arg7[%c0_10, %c0_11] : memref<9x256xf32, #tpu.memory_space<vmem>>, vector<1x256xf32>
    %12 = vector.broadcast %11 : vector<1x256xf32> to vector<8x256xf32>
    %13 = arith.mulf %10, %12 : vector<8x256xf32>
    %c16_i32 = arith.constant 16 : i32
    %14 = tpu.dynamic_rotate %9 by %c16_i32 dim 1 : vector<8x256xf32>, i32 -> vector<8x256xf32>
    %c1 = arith.constant 1 : index
    %c0_12 = arith.constant 0 : index
    %15 = vector.load %arg7[%c1, %c0_12] : memref<9x256xf32, #tpu.memory_space<vmem>>, vector<1x256xf32>
    %16 = vector.broadcast %15 : vector<1x256xf32> to vector<8x256xf32>
    %17 = arith.mulf %14, %16 : vector<8x256xf32>
    %c15_i32 = arith.constant 15 : i32
    %18 = tpu.dynamic_rotate %9 by %c15_i32 dim 1 : vector<8x256xf32>, i32 -> vector<8x256xf32>
    %c2 = arith.constant 2 : index
    %c0_13 = arith.constant 0 : index
    %19 = vector.load %arg7[%c2, %c0_13] : memref<9x256xf32, #tpu.memory_space<vmem>>, vector<1x256xf32>
    %20 = vector.broadcast %19 : vector<1x256xf32> to vector<8x256xf32>
    %21 = arith.mulf %18, %20 : vector<8x256xf32>
    %c1_i32 = arith.constant 1 : i32
    %22 = tpu.dynamic_rotate %9 by %c1_i32 dim 1 : vector<8x256xf32>, i32 -> vector<8x256xf32>
    %c3 = arith.constant 3 : index
    %c0_14 = arith.constant 0 : index
    %23 = vector.load %arg7[%c3, %c0_14] : memref<9x256xf32, #tpu.memory_space<vmem>>, vector<1x256xf32>
    %24 = vector.broadcast %23 : vector<1x256xf32> to vector<8x256xf32>
    %25 = arith.mulf %22, %24 : vector<8x256xf32>
    %c255_i32 = arith.constant 255 : i32
    %26 = tpu.dynamic_rotate %9 by %c255_i32 dim 1 : vector<8x256xf32>, i32 -> vector<8x256xf32>
    %c5 = arith.constant 5 : index
    %c0_15 = arith.constant 0 : index
    %27 = vector.load %arg7[%c5, %c0_15] : memref<9x256xf32, #tpu.memory_space<vmem>>, vector<1x256xf32>
    %28 = vector.broadcast %27 : vector<1x256xf32> to vector<8x256xf32>
    %29 = arith.mulf %26, %28 : vector<8x256xf32>
    %c241_i32 = arith.constant 241 : i32
    %30 = tpu.dynamic_rotate %9 by %c241_i32 dim 1 : vector<8x256xf32>, i32 -> vector<8x256xf32>
    %c6 = arith.constant 6 : index
    %c0_16 = arith.constant 0 : index
    %31 = vector.load %arg7[%c6, %c0_16] : memref<9x256xf32, #tpu.memory_space<vmem>>, vector<1x256xf32>
    %32 = vector.broadcast %31 : vector<1x256xf32> to vector<8x256xf32>
    %33 = arith.mulf %30, %32 : vector<8x256xf32>
    %c240_i32 = arith.constant 240 : i32
    %34 = tpu.dynamic_rotate %9 by %c240_i32 dim 1 : vector<8x256xf32>, i32 -> vector<8x256xf32>
    %c7 = arith.constant 7 : index
    %c0_17 = arith.constant 0 : index
    %35 = vector.load %arg7[%c7, %c0_17] : memref<9x256xf32, #tpu.memory_space<vmem>>, vector<1x256xf32>
    %36 = vector.broadcast %35 : vector<1x256xf32> to vector<8x256xf32>
    %37 = arith.mulf %34, %36 : vector<8x256xf32>
    %c239_i32 = arith.constant 239 : i32
    %38 = tpu.dynamic_rotate %9 by %c239_i32 dim 1 : vector<8x256xf32>, i32 -> vector<8x256xf32>
    %c8 = arith.constant 8 : index
    %c0_18 = arith.constant 0 : index
    %39 = vector.load %arg7[%c8, %c0_18] : memref<9x256xf32, #tpu.memory_space<vmem>>, vector<1x256xf32>
    %40 = vector.broadcast %39 : vector<1x256xf32> to vector<8x256xf32>
    %41 = arith.mulf %38, %40 : vector<8x256xf32>
    %42 = tpu.concatenate %13, %17, %21, %25, %9, %29, %33, %37, %41 in 0 : vector<8x256xf32>, vector<8x256xf32>, vector<8x256xf32>, vector<8x256xf32>, vector<8x256xf32>, vector<8x256xf32>, vector<8x256xf32>, vector<8x256xf32>, vector<8x256xf32> -> vector<72x256xf32>
    %c0_19 = arith.constant 0 : index
    %c0_20 = arith.constant 0 : index
    %43 = vector.load %arg5[%c0_19, %c0_20] : memref<8x72xf32, #tpu.memory_space<vmem>>, vector<8x72xf32>
    %cst_21 = arith.constant dense<0.000000e+00> : vector<8x256xf32>
    %44 = tpu.matmul %43, %42, %cst_21 {dimension_numbers = #tpu.dot_dimension_numbers<[1], [0], [0], [1], [0, 0, 1, 1], [], []>} : vector<8x72xf32>, vector<72x256xf32>, vector<8x256xf32> -> vector<8x256xf32>
    %c0_22 = arith.constant 0 : index
    %c0_23 = arith.constant 0 : index
    %45 = vector.load %arg6[%c0_22, %c0_23] : memref<8x1xf32, #tpu.memory_space<vmem>>, vector<8x1xf32>
    %46 = vector.broadcast %45 : vector<8x1xf32> to vector<8x256xf32>
    %47 = arith.addf %44, %46 : vector<8x256xf32>
    %cst_24 = arith.constant 0.000000e+00 : f32
    %48 = vector.broadcast %cst_24 : f32 to vector<8x256xf32>
    %49 = arith.maximumf %47, %48 : vector<8x256xf32>
    %c0_25 = arith.constant 0 : index
    %c0_26 = arith.constant 0 : index
    %50 = vector.load %arg8[%c0_25, %c0_26] : memref<8x256xf32, #tpu.memory_space<vmem>>, vector<8x256xf32>
    tpu.vector_store %arg8[%c0_25, %c0_26], %49 {strides = array<i32>} : memref<8x256xf32, #tpu.memory_space<vmem>>, vector<8x256xf32>,
    return
  }
}

</mosaic_0001>

<llo_original>
// kernel: tpu_custom_call.1
$region0: #{tpu_custom_call.1}
  #allocation0 [shape = 'u32[]', space=smem, size = 0x4, offset = 0x4, fixed_abs, tag = 'smem constant byte address 0x4 - core index']
  #allocation1 [shape = 'u32[144,128]{1,0:T(1,128)}', space=vmem, size = 0x12000, scoped, tag = 'internal scratch']
  %s0 = inlined_call_operand.vmem [shape: f32[8,64], index: 0, kind: input, shape index: {}]
  %s1 = inlined_call_operand.hbm [shape: f32[64,256], index: 1, kind: input, shape index: {}]
  %s2 = inlined_call_operand.vmem [shape: f32[8,16], index: 2, kind: input, shape index: {}]
  %s3 = inlined_call_operand.hbm [shape: f32[16,256], index: 3, kind: input, shape index: {}]
  %s4 = inlined_call_operand.vmem [shape: f32[8,1], index: 4, kind: input, shape index: {}]
  %s5 = inlined_call_operand.vmem [shape: f32[8,72], index: 5, kind: input, shape index: {}]
  %s6 = inlined_call_operand.vmem [shape: f32[8,1], index: 6, kind: input, shape index: {}]
  %s7 = inlined_call_operand.hbm [shape: f32[9,256], index: 7, kind: input, shape index: {}]
  %s8 = inlined_call_operand.hbm [shape: f32[8,256], index: 8, kind: output, shape index: {}]
  %s9 = sld [smem:[#allocation0]]
  $region54: #{tpu_custom_call.1} parent=0
    _
  %s11 = ssub.s32 1, %s9
  %s12 = scalar_select 0, %s11, %s9
  $region1: #{tpu_custom_call.1} parent=0
    #allocation2 [shape = 'u8[65536]{0}', space=vmem, size = 0x10000, scoped, tag = 'input window, operand 1, single buffered']
    #allocation3 [shape = 's32[1]{0}', space=sflag, size = 0x4, scoped, tag = 'scoped memory for tpu_custom_call.1']
    #allocation4 [shape = 's32[1]{0}', space=sflag, size = 0x4, scoped, tag = 'scoped memory for tpu_custom_call.1']
    #allocation5 [shape = 'u8[16384]{0}', space=vmem, size = 0x4000, scoped, tag = 'input window, operand 3, single buffered']
    #allocation6 [shape = 's32[1]{0}', space=sflag, size = 0x4, scoped, tag = 'scoped memory for tpu_custom_call.1']
    #allocation7 [shape = 'u8[16384]{0}', space=vmem, size = 0x4000, scoped, tag = 'input window, operand 7, single buffered']
    #allocation8 [shape = 'u8[8192]{0}', space=vmem, size = 0x2000, scoped, tag = 'output window, operand 0, single buffered']
    %13 = vsyncpa [#allocation3], 0
    %14 = vsyncpa [#allocation6], 0
    %15 = vsyncpa [#allocation4], 0
    // Predicated region
    $region2: #{tpu_custom_call.1} parent=1 // pred_check
      _
    $region3: #{tpu_custom_call.1} parent=1 // pred_check_branch
      %17 = sbr.rel (0) target = $region5
    $region4: #{tpu_custom_call.1} parent=1 // pred_region
      _
    $region5: #{tpu_custom_call.1} parent=1 // pred_fallthru
      _
    // Predicated region
    $region6: #{tpu_custom_call.1} parent=1 // pred_check
      _
    $region7: #{tpu_custom_call.1} parent=1 // pred_check_branch
      %19 = sbr.rel (0) target = $region9
    $region8: #{tpu_custom_call.1} parent=1 // pred_region
      %s21 = ssub.s32 2048, 2048
      %22 = vsyncadd [#allocation3], %s21
      %s23 = sshll.u32 [#allocation2], 4
      %s24 = int_to_ptr.vmem [resolvable:$true] %s23
      %29 = dma.hbm_to_vmem [thread:$0]  %s1, 2048, %s24, [#allocation3], 256, 256, 16
    $region9: #{tpu_custom_call.1} parent=1 // pred_fallthru
      _
    // Predicated region
    $region10: #{tpu_custom_call.1} parent=1 // pred_check
      _
    $region11: #{tpu_custom_call.1} parent=1 // pred_check_branch
      %31 = sbr.rel (0) target = $region13
    $region12: #{tpu_custom_call.1} parent=1 // pred_region
      _
    $region13: #{tpu_custom_call.1} parent=1 // pred_fallthru
      _
    // Predicated region
    $region14: #{tpu_custom_call.1} parent=1 // pred_check
      _
    $region15: #{tpu_custom_call.1} parent=1 // pred_check_branch
      %33 = sbr.rel (0) target = $region17
    $region16: #{tpu_custom_call.1} parent=1 // pred_region
      %s35 = ssub.s32 512, 512
      %36 = vsyncadd [#allocation6], %s35
      %s37 = sshll.u32 [#allocation5], 4
      %s38 = int_to_ptr.vmem [resolvable:$true] %s37
      %43 = dma.hbm_to_vmem [thread:$0]  %s3, 512, %s38, [#allocation6], 256, 256, 16
    $region17: #{tpu_custom_call.1} parent=1 // pred_fallthru
      _
    // Predicated region
    $region18: #{tpu_custom_call.1} parent=1 // pred_check
      _
    $region19: #{tpu_custom_call.1} parent=1 // pred_check_branch
      %45 = sbr.rel (0) target = $region21
    $region20: #{tpu_custom_call.1} parent=1 // pred_region
      _
    $region21: #{tpu_custom_call.1} parent=1 // pred_fallthru
      _
    // Predicated region
    $region22: #{tpu_custom_call.1} parent=1 // pred_check
      _
    $region23: #{tpu_custom_call.1} parent=1 // pred_check_branch
      %47 = sbr.rel (0) target = $region25
    $region24: #{tpu_custom_call.1} parent=1 // pred_region
      _
    $region25: #{tpu_custom_call.1} parent=1 // pred_fallthru
      _
    // Predicated region
    $region26: #{tpu_custom_call.1} parent=1 // pred_check
      _
    $region27: #{tpu_custom_call.1} parent=1 // pred_check_branch
      %49 = sbr.rel (0) target = $region29
    $region28: #{tpu_custom_call.1} parent=1 // pred_region
      _
    $region29: #{tpu_custom_call.1} parent=1 // pred_fallthru
      _
    // Predicated region
    $region30: #{tpu_custom_call.1} parent=1 // pred_check
      _
    $region31: #{tpu_custom_call.1} parent=1 // pred_check_branch
      %51 = sbr.rel (0) target = $region33
    $region32: #{tpu_custom_call.1} parent=1 // pred_region
      %s53 = ssub.s32 512, 512
      %54 = vsyncadd [#allocation6], %s53
      %s55 = sshll.u32 [#allocation7], 4
      %s56 = int_to_ptr.vmem [resolvable:$true] %s55
      %61 = dma.hbm_to_vmem [thread:$0]  %s7, 512, %s56, [#allocation6], 256, 256, 16
    $region33: #{tpu_custom_call.1} parent=1 // pred_fallthru
      _
    // Predicated region
    $region34: #{tpu_custom_call.1} parent=1 // pred_check
      _
    $region35: #{tpu_custom_call.1} parent=1 // pred_check_branch
      %63 = sbr.rel (0) target = $region37
    $region36: #{tpu_custom_call.1} parent=1 // pred_region
      %64 = dma.done [#allocation3], 2048
    $region37: #{tpu_custom_call.1} parent=1 // pred_fallthru
      _
    // Predicated region
    $region38: #{tpu_custom_call.1} parent=1 // pred_check
      _
    $region39: #{tpu_custom_call.1} parent=1 // pred_check_branch
      %66 = sbr.rel (0) target = $region41
    $region40: #{tpu_custom_call.1} parent=1 // pred_region
      %67 = dma.done [#allocation6], 512
    $region41: #{tpu_custom_call.1} parent=1 // pred_fallthru
      _
    // Predicated region
    $region42: #{tpu_custom_call.1} parent=1 // pred_check
      _
    $region43: #{tpu_custom_call.1} parent=1 // pred_check_branch
      %69 = sbr.rel (0) target = $region45
    $region44: #{tpu_custom_call.1} parent=1 // pred_region
      %70 = dma.done [#allocation6], 512
    $region45: #{tpu_custom_call.1} parent=1 // pred_fallthru
      _
    %v71 = vld [vmem:[%s0] sm:$0xff]
    %v72 = vld [vmem:[#allocation2] sm:$0xff]
    %v73 = vld [vmem:[#allocation2 + $0x8] sm:$0xff]
    %v74 = vld [vmem:[#allocation2 + $0x10] sm:$0xff]
    %v75 = vld [vmem:[#allocation2 + $0x18] sm:$0xff]
    %v76 = vld [vmem:[#allocation2 + $0x20] sm:$0xff]
    %v77 = vld [vmem:[#allocation2 + $0x28] sm:$0xff]
    %v78 = vld [vmem:[#allocation2 + $0x30] sm:$0xff]
    %v79 = vld [vmem:[#allocation2 + $0x38] sm:$0xff]
    %v80 = vld [vmem:[#allocation2 + $0x40] sm:$0xff]
    %v81 = vld [vmem:[#allocation2 + $0x48] sm:$0xff]
    %v82 = vld [vmem:[#allocation2 + $0x50] sm:$0xff]
    %v83 = vld [vmem:[#allocation2 + $0x58] sm:$0xff]
    %v84 = vld [vmem:[#allocation2 + $0x60] sm:$0xff]
    %v85 = vld [vmem:[#allocation2 + $0x68] sm:$0xff]
    %v86 = vld [vmem:[#allocation2 + $0x70] sm:$0xff]
    %v87 = vld [vmem:[#allocation2 + $0x78] sm:$0xff]
    %v88 = vld [vmem:[%s2] sm:$0xff]
    %v89 = vld [vmem:[#allocation5] sm:$0xff]
    %v90 = vld [vmem:[#allocation5 + $0x8] sm:$0xff]
    %v91 = vld [vmem:[#allocation5 + $0x10] sm:$0xff]
    %v92 = vld [vmem:[#allocation5 + $0x18] sm:$0xff]
    %vm93 = vcmask 130048
    %v95 = vsel %vm93, %v88, 0
    %97 = vmatprep.subr.mxu0 0.0
    %98 = vmatpush1.msra.mxu0 0.0
    %99 = vmatprep.subr.mxu0 0.0
    %100 = vmatpush1.msra.mxu0 0.0
    %101 = vmatprep.subr.mxu0 0.0
    %102 = vmatpush1.msra.mxu0 0.0
    %103 = vmatprep.subr.mxu0 0.0
    %104 = vmatpush1.msra.mxu0 0.0
    %105 = vmatprep.subr.mxu0 0.0
    %106 = vmatpush1.msra.mxu0 0.0
    %107 = vmatprep.subr.mxu0 0.0
    %108 = vmatpush1.msra.mxu0 0.0
    %109 = vmatprep.subr.mxu0 0.0
    %110 = vmatpush1.msra.mxu0 0.0
    %111 = vmatprep.subr.mxu0 0.0
    %112 = vmatpush1.msra.mxu0 0.0
    %113 = vmatprep.subr.mxu0 0.0
    %114 = vmatpush1.msra.mxu0 0.0
    %115 = vmatprep.subr.mxu0 0.0
    %116 = vmatpush1.msra.mxu0 0.0
    %117 = vmatprep.subr.mxu0 0.0
    %118 = vmatpush1.msra.mxu0 0.0
    %119 = vmatprep.subr.mxu0 0.0
    %120 = vmatpush1.msra.mxu0 0.0
    %121 = vmatprep.subr.mxu0 0.0
    %122 = vmatpush1.msra.mxu0 0.0
    %123 = vmatprep.subr.mxu0 0.0
    %124 = vmatpush1.msra.mxu0 0.0
    %125 = vmatprep.subr.mxu0 %v92
    %126 = vmatpush1.msra.mxu0 %v91
    %127 = vmatprep.subr.mxu0 %v90
    %128 = vmatpush1.msra.mxu0 %v89
    %129 = vmatprep.subr.mxu0 0.0
    %130 = vmatpush2.msra.mxu0 0.0
    %131 = vmatprep.subr.mxu0 0.0
    %132 = vmatpush2.msra.mxu0 0.0
    %133 = vmatprep.subr.mxu0 0.0
    %134 = vmatpush2.msra.mxu0 0.0
    %135 = vmatprep.subr.mxu0 0.0
    %136 = vmatpush2.msra.mxu0 0.0
    %137 = vmatprep.subr.mxu0 0.0
    %138 = vmatpush2.msra.mxu0 0.0
    %139 = vmatprep.subr.mxu0 0.0
    %140 = vmatpush2.msra.mxu0 0.0
    %141 = vmatprep.subr.mxu0 0.0
    %142 = vmatpush2.msra.mxu0 0.0
    %143 = vmatprep.subr.mxu0 0.0
    %144 = vmatpush2.msra.mxu0 0.0
    %145 = vmatprep.subr.mxu0 0.0
    %146 = vmatpush2.msra.mxu0 0.0
    %147 = vmatprep.subr.mxu0 0.0
    %148 = vmatpush2.msra.mxu0 0.0
    %149 = vmatprep.subr.mxu0 0.0
    %150 = vmatpush2.msra.mxu0 0.0
    %151 = vmatprep.subr.mxu0 0.0
    %152 = vmatpush2.msra.mxu0 0.0
    %153 = vmatprep.subr.mxu0 0.0
    %154 = vmatpush2.msra.mxu0 0.0
    %155 = vmatprep.subr.mxu0 0.0
    %156 = vmatpush2.msra.mxu0 0.0
    %157 = vmatprep.subr.mxu0 0.0
    %158 = vmatpush2.msra.mxu0 0.0
    %159 = vmatprep.subr.mxu0 0.0
    %160 = vmatpush2.msra.mxu0 0.0
    %161 = vmatprep.mubr.f32.mxu0 0.0
    %162 = vmatmul.mubr.f32.gmra.mxu0 %v95
    %v163 = vpop.f32.mrf.mxu0
    %v164 = vadd.f32 0.0, %v163
    %v165 = vpop.f32.mrf.mxu0
    %v166 = vadd.f32 0.0, %v165
    %167 = vdwg.mxu0
    %vm168 = vcmask 523264
    %v170 = vsel %vm168, %v71, 0
    %172 = vmatprep.subr.mxu0 0.0
    %173 = vmatpush1.msra.mxu0 0.0
    %174 = vmatprep.subr.mxu0 0.0
    %175 = vmatpush1.msra.mxu0 0.0
    %176 = vmatprep.subr.mxu0 0.0
    %177 = vmatpush1.msra.mxu0 0.0
    %178 = vmatprep.subr.mxu0 0.0
    %179 = vmatpush1.msra.mxu0 0.0
    %180 = vmatprep.subr.mxu0 0.0
    %181 = vmatpush1.msra.mxu0 0.0
    %182 = vmatprep.subr.mxu0 0.0
    %183 = vmatpush1.msra.mxu0 0.0
    %184 = vmatprep.subr.mxu0 0.0
    %185 = vmatpush1.msra.mxu0 0.0
    %186 = vmatprep.subr.mxu0 0.0
    %187 = vmatpush1.msra.mxu0 0.0
    %188 = vmatprep.subr.mxu0 %v87
    %189 = vmatpush1.msra.mxu0 %v86
    %190 = vmatprep.subr.mxu0 %v85
    %191 = vmatpush1.msra.mxu0 %v84
    %192 = vmatprep.subr.mxu0 %v83
    %193 = vmatpush1.msra.mxu0 %v82
    %194 = vmatprep.subr.mxu0 %v81
    %195 = vmatpush1.msra.mxu0 %v80
    %196 = vmatprep.subr.mxu0 %v79
    %197 = vmatpush1.msra.mxu0 %v78
    %198 = vmatprep.subr.mxu0 %v77
    %199 = vmatpush1.msra.mxu0 %v76
    %200 = vmatprep.subr.mxu0 %v75
    %201 = vmatpush1.msra.mxu0 %v74
    %202 = vmatprep.subr.mxu0 %v73
    %203 = vmatpush1.msra.mxu0 %v72
    %204 = vmatprep.subr.mxu0 0.0
    %205 = vmatpush2.msra.mxu0 0.0
    %206 = vmatprep.subr.mxu0 0.0
    %207 = vmatpush2.msra.mxu0 0.0
    %208 = vmatprep.subr.mxu0 0.0
    %209 = vmatpush2.msra.mxu0 0.0
    %210 = vmatprep.subr.mxu0 0.0
    %211 = vmatpush2.msra.mxu0 0.0
    %212 = vmatprep.subr.mxu0 0.0
    %213 = vmatpush2.msra.mxu0 0.0
    %214 = vmatprep.subr.mxu0 0.0
    %215 = vmatpush2.msra.mxu0 0.0
    %216 = vmatprep.subr.mxu0 0.0
    %217 = vmatpush2.msra.mxu0 0.0
    %218 = vmatprep.subr.mxu0 0.0
    %219 = vmatpush2.msra.mxu0 0.0
    %220 = vmatprep.subr.mxu0 0.0
    %221 = vmatpush2.msra.mxu0 0.0
    %222 = vmatprep.subr.mxu0 0.0
    %223 = vmatpush2.msra.mxu0 0.0
    %224 = vmatprep.subr.mxu0 0.0
    %225 = vmatpush2.msra.mxu0 0.0
    %226 = vmatprep.subr.mxu0 0.0
    %227 = vmatpush2.msra.mxu0 0.0
    %228 = vmatprep.subr.mxu0 0.0
    %229 = vmatpush2.msra.mxu0 0.0
    %230 = vmatprep.subr.mxu0 0.0
    %231 = vmatpush2.msra.mxu0 0.0
    %232 = vmatprep.subr.mxu0 0.0
    %233 = vmatpush2.msra.mxu0 0.0
    %234 = vmatprep.subr.mxu0 0.0
    %235 = vmatpush2.msra.mxu0 0.0
    %236 = vmatprep.mubr.f32.mxu0 0.0
    %237 = vmatmul.mubr.f32.gmra.mxu0 %v170
    %v238 = vpop.f32.mrf.mxu0
    %v239 = vadd.f32 %v164, %v238
    %v240 = vpop.f32.mrf.mxu0
    %v241 = vadd.f32 %v166, %v240
    %242 = vdwg.mxu0
    %v243 = vld [vmem:[%s4] sm:$0xff]
    %245 = vset.pattern.permute.xlu0 0
    %246 = vperm.xlu0 %245, %v243
    %v247 = vpop.permute.xlu0 %246
    %v249 = vadd.f32 %v239, %v247
    %v250 = vadd.f32 %v241, %v247
    %251 = vrot.lane.b32.xlu0 %v249, 17
    %v252 = vpop.permute.xlu0 %251
    %253 = vrot.lane.b32.xlu0 %v250, 17
    %v254 = vpop.permute.xlu0 %253
    %v255 = vlaneseq
    %v256 = vand.u32 %v255, 127
    %vm257 = vcmp.lt.s32.totalorder %v256, 17
    %v258 = vsel %vm257, %v252, %v254
    %v259 = vsel %vm257, %v254, %v252
    %v260 = vld [vmem:[#allocation7] ss:$8 sm:$0x3]
    %v262 = vlaneseq
    %v263 = vshrl.u32 %v262, 7
    %v264 = vsub.s32 0, %v263
    %v265 = vrot.slane %v260, %v264
    %v266 = vlaneseq
    %v267 = vshrl.u32 %v266, 7
    %v268 = vsub.s32 1, %v267
    %v269 = vrot.slane %v260, %v268
    %v272 = vmul.f32 %v259, %v265
    %v273 = vmul.f32 %v258, %v269
    %274 = vrot.lane.b32.xlu0 %v249, 16
    %v275 = vpop.permute.xlu0 %274
    %276 = vrot.lane.b32.xlu0 %v250, 16
    %v277 = vpop.permute.xlu0 %276
    %vm278 = vcmp.lt.s32.totalorder %v256, 16
    %v279 = vsel %vm278, %v275, %v277
    %v280 = vsel %vm278, %v277, %v275
    %s281 = scalar_lea.vmem [#allocation7], 1
    %v282 = vld [vmem:[%s281] ss:$8 sm:$0x3]
    %v284 = vlaneseq
    %v285 = vshrl.u32 %v284, 7
    %v286 = vsub.s32 0, %v285
    %v287 = vrot.slane %v282, %v286
    %v288 = vlaneseq
    %v289 = vshrl.u32 %v288, 7
    %v290 = vsub.s32 1, %v289
    %v291 = vrot.slane %v282, %v290
    %v294 = vmul.f32 %v280, %v287
    %v295 = vmul.f32 %v279, %v291
    %296 = vrot.lane.b32.xlu0 %v249, 15
    %v297 = vpop.permute.xlu0 %296
    %298 = vrot.lane.b32.xlu0 %v250, 15
    %v299 = vpop.permute.xlu0 %298
    %vm300 = vcmp.lt.s32.totalorder %v256, 15
    %v301 = vsel %vm300, %v297, %v299
    %v302 = vsel %vm300, %v299, %v297
    %s303 = scalar_lea.vmem [#allocation7], 2
    %v304 = vld [vmem:[%s303] ss:$8 sm:$0x3]
    %v306 = vlaneseq
    %v307 = vshrl.u32 %v306, 7
    %v308 = vsub.s32 0, %v307
    %v309 = vrot.slane %v304, %v308
    %v310 = vlaneseq
    %v311 = vshrl.u32 %v310, 7
    %v312 = vsub.s32 1, %v311
    %v313 = vrot.slane %v304, %v312
    %v316 = vmul.f32 %v302, %v309
    %v317 = vmul.f32 %v301, %v313
    %318 = vrot.lane.b32.xlu0 %v249, 1
    %v319 = vpop.permute.xlu0 %318
    %320 = vrot.lane.b32.xlu0 %v250, 1
    %v321 = vpop.permute.xlu0 %320
    %vm322 = vcmp.lt.s32.totalorder %v256, 1
    %v323 = vsel %vm322, %v319, %v321
    %v324 = vsel %vm322, %v321, %v319
    %s325 = scalar_lea.vmem [#allocation7], 3
    %v326 = vld [vmem:[%s325] ss:$8 sm:$0x3]
    %v328 = vlaneseq
    %v329 = vshrl.u32 %v328, 7
    %v330 = vsub.s32 0, %v329
    %v331 = vrot.slane %v326, %v330
    %v332 = vlaneseq
    %v333 = vshrl.u32 %v332, 7
    %v334 = vsub.s32 1, %v333
    %v335 = vrot.slane %v326, %v334
    %v338 = vmul.f32 %v324, %v331
    %v339 = vmul.f32 %v323, %v335
    %340 = vrot.lane.b32.xlu0 %v249, 127
    %v341 = vpop.permute.xlu0 %340
    %342 = vrot.lane.b32.xlu0 %v250, 127
    %v343 = vpop.permute.xlu0 %342
    %vm344 = vcmp.lt.s32.totalorder %v256, 127
    %v345 = vsel %vm344, %v341, %v343
    %v346 = vsel %vm344, %v343, %v341
    %s347 = scalar_lea.vmem [#allocation7], 5
    %v348 = vld [vmem:[%s347] ss:$8 sm:$0x3]
    %v350 = vlaneseq
    %v351 = vshrl.u32 %v350, 7
    %v352 = vsub.s32 0, %v351
    %v353 = vrot.slane %v348, %v352
    %v354 = vlaneseq
    %v355 = vshrl.u32 %v354, 7
    %v356 = vsub.s32 1, %v355
    %v357 = vrot.slane %v348, %v356
    %v360 = vmul.f32 %v345, %v353
    %v361 = vmul.f32 %v346, %v357
    %362 = vrot.lane.b32.xlu0 %v249, 113
    %v363 = vpop.permute.xlu0 %362
    %364 = vrot.lane.b32.xlu0 %v250, 113
    %v365 = vpop.permute.xlu0 %364
    %vm366 = vcmp.lt.s32.totalorder %v256, 113
    %v367 = vsel %vm366, %v363, %v365
    %v368 = vsel %vm366, %v365, %v363
    %s369 = scalar_lea.vmem [#allocation7], 6
    %v370 = vld [vmem:[%s369] ss:$8 sm:$0x3]
    %v372 = vlaneseq
    %v373 = vshrl.u32 %v372, 7
    %v374 = vsub.s32 0, %v373
    %v375 = vrot.slane %v370, %v374
    %v376 = vlaneseq
    %v377 = vshrl.u32 %v376, 7
    %v378 = vsub.s32 1, %v377
    %v379 = vrot.slane %v370, %v378
    %v382 = vmul.f32 %v367, %v375
    %v383 = vmul.f32 %v368, %v379
    %384 = vrot.lane.b32.xlu0 %v249, 112
    %v385 = vpop.permute.xlu0 %384
    %386 = vrot.lane.b32.xlu0 %v250, 112
    %v387 = vpop.permute.xlu0 %386
    %vm388 = vcmp.lt.s32.totalorder %v256, 112
    %v389 = vsel %vm388, %v385, %v387
    %v390 = vsel %vm388, %v387, %v385
    %s391 = scalar_lea.vmem [#allocation7], 7
    %v392 = vld [vmem:[%s391] ss:$8 sm:$0x3]
    %v394 = vlaneseq
    %v395 = vshrl.u32 %v394, 7
    %v396 = vsub.s32 0, %v395
    %v397 = vrot.slane %v392, %v396
    %v398 = vlaneseq
    %v399 = vshrl.u32 %v398, 7
    %v400 = vsub.s32 1, %v399
    %v401 = vrot.slane %v392, %v400
    %v404 = vmul.f32 %v389, %v397
    %v405 = vmul.f32 %v390, %v401
    %406 = vrot.lane.b32.xlu0 %v249, 111
    %v407 = vpop.permute.xlu0 %406
    %408 = vrot.lane.b32.xlu0 %v250, 111
    %v409 = vpop.permute.xlu0 %408
    %vm410 = vcmp.lt.s32.totalorder %v256, 111
    %v411 = vsel %vm410, %v407, %v409
    %v412 = vsel %vm410, %v409, %v407
    %s413 = scalar_lea.vmem [#allocation7], 16
    %v414 = vld [vmem:[%s413] ss:$8 sm:$0x3]
    %v416 = vlaneseq
    %v417 = vshrl.u32 %v416, 7
    %v418 = vsub.s32 0, %v417
    %v419 = vrot.slane %v414, %v418
    %v420 = vlaneseq
    %v421 = vshrl.u32 %v420, 7
    %v422 = vsub.s32 1, %v421
    %v423 = vrot.slane %v414, %v422
    %v426 = vmul.f32 %v411, %v419
    %v427 = vmul.f32 %v412, %v423
    %v428 = vld [vmem:[%s5] sm:$0xff]
    %v429 = vld [vmem:[%s6] sm:$0xff]
    %431 = vset.pattern.permute.xlu0 0
    %432 = vperm.xlu0 %431, %v429
    %v433 = vpop.permute.xlu0 %432
    %vm435 = vcmask 588800
    %v437 = vsel %vm435, %v428, 0
    %439 = vmatprep.subr.mxu0 0.0
    %440 = vmatpush1.msra.mxu0 0.0
    %441 = vmatprep.subr.mxu0 0.0
    %442 = vmatpush1.msra.mxu0 0.0
    %443 = vmatprep.subr.mxu0 0.0
    %444 = vmatpush1.msra.mxu0 0.0
    %445 = vmatprep.subr.mxu0 0.0
    %446 = vmatpush1.msra.mxu0 0.0
    %447 = vmatprep.subr.mxu0 0.0
    %448 = vmatpush1.msra.mxu0 0.0
    %449 = vmatprep.subr.mxu0 0.0
    %450 = vmatpush1.msra.mxu0 0.0
    %451 = vmatprep.subr.mxu0 0.0
    %452 = vmatpush1.msra.mxu0 0.0
    %453 = vmatprep.subr.mxu0 %v427
    %454 = vmatpush1.msra.mxu0 %v426
    %455 = vmatprep.subr.mxu0 %v405
    %456 = vmatpush1.msra.mxu0 %v404
    %457 = vmatprep.subr.mxu0 %v383
    %458 = vmatpush1.msra.mxu0 %v382
    %459 = vmatprep.subr.mxu0 %v361
    %460 = vmatpush1.msra.mxu0 %v360
    %461 = vmatprep.subr.mxu0 %v250
    %462 = vmatpush1.msra.mxu0 %v249
    %463 = vmatprep.subr.mxu0 %v339
    %464 = vmatpush1.msra.mxu0 %v338
    %465 = vmatprep.subr.mxu0 %v317
    %466 = vmatpush1.msra.mxu0 %v316
    %467 = vmatprep.subr.mxu0 %v295
    %468 = vmatpush1.msra.mxu0 %v294
    %469 = vmatprep.subr.mxu0 %v273
    %470 = vmatpush1.msra.mxu0 %v272
    %471 = vmatprep.subr.mxu0 0.0
    %472 = vmatpush2.msra.mxu0 0.0
    %473 = vmatprep.subr.mxu0 0.0
    %474 = vmatpush2.msra.mxu0 0.0
    %475 = vmatprep.subr.mxu0 0.0
    %476 = vmatpush2.msra.mxu0 0.0
    %477 = vmatprep.subr.mxu0 0.0
    %478 = vmatpush2.msra.mxu0 0.0
    %479 = vmatprep.subr.mxu0 0.0
    %480 = vmatpush2.msra.mxu0 0.0
    %481 = vmatprep.subr.mxu0 0.0
    %482 = vmatpush2.msra.mxu0 0.0
    %483 = vmatprep.subr.mxu0 0.0
    %484 = vmatpush2.msra.mxu0 0.0
    %485 = vmatprep.subr.mxu0 0.0
    %486 = vmatpush2.msra.mxu0 0.0
    %487 = vmatprep.subr.mxu0 0.0
    %488 = vmatpush2.msra.mxu0 0.0
    %489 = vmatprep.subr.mxu0 0.0
    %490 = vmatpush2.msra.mxu0 0.0
    %491 = vmatprep.subr.mxu0 0.0
    %492 = vmatpush2.msra.mxu0 0.0
    %493 = vmatprep.subr.mxu0 0.0
    %494 = vmatpush2.msra.mxu0 0.0
    %495 = vmatprep.subr.mxu0 0.0
    %496 = vmatpush2.msra.mxu0 0.0
    %497 = vmatprep.subr.mxu0 0.0
    %498 = vmatpush2.msra.mxu0 0.0
    %499 = vmatprep.subr.mxu0 0.0
    %500 = vmatpush2.msra.mxu0 0.0
    %501 = vmatprep.subr.mxu0 0.0
    %502 = vmatpush2.msra.mxu0 0.0
    %503 = vmatprep.mubr.f32.mxu0 0.0
    %504 = vmatmul.mubr.f32.gmra.mxu0 %v437
    %v505 = vpop.f32.mrf.mxu0
    %v506 = vadd.f32 %v433, %v505
    %v507 = vpop.f32.mrf.mxu0
    %v508 = vadd.f32 %v433, %v507
    %509 = vdwg.mxu0
    %v510 = vmax.f32 %v506, 0.0
    %v511 = vmax.f32 %v508, 0.0
    %512 = vst [vmem:[#allocation8] sm:$0xff] %v510
    %513 = vst [vmem:[#allocation8 + $0x8] sm:$0xff] %v511
    // Predicated region
    $region46: #{tpu_custom_call.1} parent=1 // pred_check
      _
    $region47: #{tpu_custom_call.1} parent=1 // pred_check_branch
      %515 = sbr.rel (0) target = $region49
    $region48: #{tpu_custom_call.1} parent=1 // pred_region
      %s517 = ssub.s32 256, 256
      %518 = vsyncadd [#allocation4], %s517
      %s520 = sshll.u32 [#allocation8], 4
      %s521 = int_to_ptr.vmem [resolvable:$true] %s520
      %523 = dma.vmem_to_hbm [thread:$0]  %s521, 256, %s8, [#allocation4]
    $region49: #{tpu_custom_call.1} parent=1 // pred_fallthru
      _
    // Predicated region
    $region50: #{tpu_custom_call.1} parent=1 // pred_check
      _
    $region51: #{tpu_custom_call.1} parent=1 // pred_check_branch
      %525 = sbr.rel (0) target = $region53
    $region52: #{tpu_custom_call.1} parent=1 // pred_region
      %526 = dma.done [#allocation4], 256
    $region53: #{tpu_custom_call.1} parent=1 // pred_fallthru
      _
    %527 = vsyncpa [#allocation3], 1
    %528 = vsyncpa [#allocation6], 1
    %529 = vsyncpa [#allocation4], 1

</llo_original>
